<compile_context>
chip_gen: v6e
topology: v6e:2x2x1
jax: 0.10.0
libtpu: 0.0.40
codegen_flags: <defaults>
</compile_context>

<pallas_src>
import functools

import numpy as np
import jax
import jax.numpy as jnp
from jax import lax
from jax.experimental import pallas as pl
from jax.experimental.pallas import tpu as pltpu

_BN_EPS = 1e-5


def _fold_bn(gamma, beta, mean, var):
    scale = gamma / jnp.sqrt(var + _BN_EPS)
    shift = beta - mean * scale
    return scale, shift


def _band_conv_w(w, w_in, stride, pad):
    """(KH,KW,Cin,Cout) conv weights -> per-kh banded matmul weights.

    Returns (KH, w_in*Cin, Wo*Cout) bf16.  Row-block iw of band[kh] carries
    w[kh, kw] in column-block ow whenever iw == ow*stride + kw - pad is a valid
    input column, so a single (rows, w_in*Cin) x (w_in*Cin, Wo*Cout) matmul
    evaluates the whole conv along W (with its zero padding and W stride folded
    into the band) for one kh tap.
    """
    KH, KW, Cin, Cout = w.shape
    Wo = (w_in + 2 * pad - KW) // stride + 1
    wn = np.asarray(w, np.float32)
    band = np.zeros((KH, w_in * Cin, Wo * Cout), np.float32)
    for kh in range(KH):
        for ow in range(Wo):
            for kw in range(KW):
                iw = ow * stride + kw - pad
                if 0 <= iw < w_in:
                    band[kh, iw * Cin:(iw + 1) * Cin,
                         ow * Cout:(ow + 1) * Cout] = wn[kh, kw]
    return jnp.asarray(band, jnp.bfloat16), Wo


# ----------------------------------------------------------------------------
# Fused kernel: conv1+bn1+relu -> conv2+bn2+relu -> (+shortcut) -> relu
# ----------------------------------------------------------------------------
def _basic_kernel(x_ref, w1_ref, s1_ref, b1_ref, w2_ref, s2_ref, b2_ref,
                  *rest, stride, has_shortcut):
    """One batch element per grid step.

    x_ref : (1, H, W*Cin)          bf16   whole image, (W,Cin) folded on lanes
    w1_ref: (3, W*Cin, Wo*C1)      bf16   banded conv1 weights (one per kh)
    w2_ref: (3, Wo*C1, Wo*C2)      bf16   banded conv2 weights
    s*/b* : (1, Wo*C)              f32    folded BN scale / shift, tiled over Wo
    ws_ref: (W*Cin, Wo*C2)         bf16   banded 1x1 projection (if shortcut)
    o_ref : (1, Ho, Wo*C2)         bf16   lane-dense output block
    xp_ref: (H+2, W*Cin)           f32    H-padded input scratch
    yp_ref: (Ho+2, Wo*C1)          bf16   H-padded conv1-output scratch
    """
    if has_shortcut:
        ws_ref, ss_ref, bs_ref, o_ref, xp_ref, yp_ref = rest
    else:
        o_ref, xp_ref, yp_ref = rest

    H = x_ref.shape[1]
    WC = x_ref.shape[2]           # W * Cin
    Ho = o_ref.shape[1]
    N1 = w1_ref.shape[2]          # Wo * C1
    N2 = o_ref.shape[2]           # Wo * C2

    # ---- stage 0: H-pad the input into VMEM (W padding lives in the band).
    # f32 scratch so the stride-2 sublane reads below stay on 32-bit rows.
    zrow = jnp.zeros((1, WC), jnp.float32)
    xp_ref[pl.ds(0, 1), :] = zrow
    xp_ref[pl.ds(H + 1, 1), :] = zrow
    xp_ref[pl.ds(1, H), :] = x_ref[0].astype(jnp.float32)

    def xrows(start):
        if stride == 1:
            r = xp_ref[pl.ds(start, Ho), :]
        else:
            r = xp_ref[pl.ds(start, Ho, stride=stride), :]
        return r.astype(jnp.bfloat16)

    # ---- conv1 (3x3, stride=s) + bn1 + relu : 3 matmuls, K=W*Cin, N=Wo*C1
    acc1 = jnp.zeros((Ho, N1), jnp.float32)
    for kh in range(3):
        acc1 = acc1 + jnp.dot(xrows(kh), w1_ref[kh],
                              preferred_element_type=jnp.float32)
    out1 = jnp.maximum(acc1 * s1_ref[...] + b1_ref[...], 0.0).astype(jnp.bfloat16)

    # ---- stage 1 activation stays in VMEM, H-padded for conv2
    zrow1 = jnp.zeros((1, N1), jnp.bfloat16)
    yp_ref[pl.ds(0, 1), :] = zrow1
    yp_ref[pl.ds(Ho + 1, 1), :] = zrow1
    yp_ref[pl.ds(1, Ho), :] = out1

    # ---- conv2 (3x3, stride=1) + bn2 + relu
    acc2 = jnp.zeros((Ho, N2), jnp.float32)
    for kh in range(3):
        acc2 = acc2 + jnp.dot(yp_ref[pl.ds(kh, Ho), :], w2_ref[kh],
                              preferred_element_type=jnp.float32)
    out2 = jnp.maximum(acc2 * s2_ref[...] + b2_ref[...], 0.0)

    # ---- shortcut, fused: 1x1 conv + bn (projection) or identity
    if has_shortcut:
        sc = jnp.dot(xrows(1), ws_ref[...], preferred_element_type=jnp.float32)
        sc = sc * ss_ref[...] + bs_ref[...]
    else:
        sc = x_ref[0].astype(jnp.float32)     # stride==1, Cin==Cout here

    # ---- residual add + final relu; lane-dense bf16 store
    o_ref[0] = jnp.maximum(out2 + sc, 0.0).astype(o_ref.dtype)


# ----------------------------------------------------------------------------
# Basic block (parameters initialized deterministically in-script)
# ----------------------------------------------------------------------------
class BasicPallas:
    def __init__(self, in_channels, channels, expansion=1, stride=1, key=None):
        if key is None:
            key = jax.random.PRNGKey(42)
        out_channels = expansion * channels
        self.in_channels = in_channels
        self.channels = channels
        self.out_channels = out_channels
        self.stride = stride
        self.has_shortcut = (stride != 1) or (in_channels != out_channels)
        ks = jax.random.split(key, 6)

        def conv_w(k, kh, kw, cin, cout):
            # stored as (KH, KW, Cin, Cout) (HWIO) for the NHWC formulation
            return 0.1 * jax.random.normal(k, (kh, kw, cin, cout), jnp.float32)

        def bn_params(k, c):
            k1, k2, k3, k4 = jax.random.split(k, 4)
            gamma = 0.5 + jax.random.uniform(k1, (c,), jnp.float32)
            beta = 0.1 * jax.random.normal(k2, (c,), jnp.float32)
            mean = 0.1 * jax.random.normal(k3, (c,), jnp.float32)
            var = 0.5 + jax.random.uniform(k4, (c,), jnp.float32)
            return _fold_bn(gamma, beta, mean, var)

        self.w1 = conv_w(ks[0], 3, 3, in_channels, channels)
        self.s1, self.b1 = bn_params(ks[1], channels)
        self.w2 = conv_w(ks[2], 3, 3, channels, out_channels)
        self.s2, self.b2 = bn_params(ks[3], out_channels)
        if self.has_shortcut:
            self.ws = conv_w(ks[4], 1, 1, in_channels, out_channels)
            self.ss, self.bs = bn_params(ks[5], out_channels)
        self._cache = {}     # (N,H,W) -> jitted forward

    # ---- build banded weights / specs once per input geometry ----------------
    def _prepare(self, N, H, W):
        Cin, C1, C2, s = self.in_channels, self.channels, self.out_channels, self.stride
        w1b, Wo = _band_conv_w(self.w1, W, s, 1)        # (3, W*Cin, Wo*C1)
        w2b, Wo2 = _band_conv_w(self.w2, Wo, 1, 1)      # (3, Wo*C1, Wo*C2)
        assert Wo2 == Wo
        Ho = (H + 2 - 3) // s + 1
        WC, N1, N2 = W * Cin, Wo * C1, Wo * C2

        def tile_cs(v, n):                               # per-channel -> per (ow, c)
            return jnp.tile(v.astype(jnp.float32), n).reshape(1, -1)

        consts = [w1b, tile_cs(self.s1, Wo), tile_cs(self.b1, Wo),
                  w2b, tile_cs(self.s2, Wo), tile_cs(self.b2, Wo)]
        in_specs = [
            pl.BlockSpec((1, H, WC), lambda n: (n, 0, 0)),
            pl.BlockSpec((3, WC, N1), lambda n: (0, 0, 0)),
            pl.BlockSpec((1, N1), lambda n: (0, 0)),
            pl.BlockSpec((1, N1), lambda n: (0, 0)),
            pl.BlockSpec((3, N1, N2), lambda n: (0, 0, 0)),
            pl.BlockSpec((1, N2), lambda n: (0, 0)),
            pl.BlockSpec((1, N2), lambda n: (0, 0)),
        ]
        if self.has_shortcut:
            wsb, _ = _band_conv_w(self.ws, W, s, 0)      # (1, W*Cin, Wo*C2)
            consts += [wsb[0], tile_cs(self.ss, Wo), tile_cs(self.bs, Wo)]
            in_specs += [
                pl.BlockSpec((WC, N2), lambda n: (0, 0)),
                pl.BlockSpec((1, N2), lambda n: (0, 0)),
                pl.BlockSpec((1, N2), lambda n: (0, 0)),
            ]

        flops = N * (6 * Ho * WC * N1 + 6 * Ho * N1 * N2
                     + (2 * Ho * WC * N2 if self.has_shortcut else 0))
        bytes_accessed = 2 * (N * H * WC + 3 * WC * N1 + 3 * N1 * N2 + N * Ho * N2)
        if self.has_shortcut:
            bytes_accessed += 2 * WC * N2
        bytes_accessed += 4 * 4 * (N1 + N2)

        kern = functools.partial(_basic_kernel, stride=s,
                                 has_shortcut=self.has_shortcut)
        call = pl.pallas_call(
            kern,
            out_shape=jax.ShapeDtypeStruct((N, Ho, N2), jnp.bfloat16),
            grid=(N,),
            in_specs=in_specs,
            out_specs=pl.BlockSpec((1, Ho, N2), lambda n: (n, 0, 0)),
            scratch_shapes=[pltpu.VMEM((H + 2, WC), jnp.float32),
                            pltpu.VMEM((Ho + 2, N1), jnp.bfloat16)],
            compiler_params=pltpu.CompilerParams(
                dimension_semantics=("parallel",)),
            cost_estimate=pl.CostEstimate(flops=flops, transcendentals=0,
                                          bytes_accessed=bytes_accessed),
        )

        def fwd(x_nchw):
            x = jnp.transpose(x_nchw, (0, 2, 3, 1)).astype(jnp.bfloat16)  # NHWC bf16
            x = x.reshape(N, H, WC)                       # fold (W,Cin) on lanes (free)
            y = call(x, *consts)                          # (N, Ho, Wo*C2) bf16
            y = y.reshape(N, Ho, Wo, C2).astype(jnp.float32)
            return jnp.transpose(y, (0, 3, 1, 2))         # -> NCHW f32

        return jax.jit(fwd)

    def __call__(self, x_nchw):
        N, Cin, H, W = x_nchw.shape
        assert Cin == self.in_channels
        key = (N, H, W)
        if key not in self._cache:
            self._cache[key] = self._prepare(N, H, W)
        return self._cache[key](x_nchw)


# ----------------------------------------------------------------------------
# Pure-JAX reference (same math, same bf16 rounding points) for correctness
# ----------------------------------------------------------------------------
def _ref_forward(block, x_nchw):
    x = jnp.transpose(x_nchw, (0, 2, 3, 1))
    xb = x.astype(jnp.bfloat16)

    def conv(xh, w, stride, pad):
        return lax.conv_general_dilated(
            xh, w.astype(jnp.bfloat16), (stride, stride),
            [(pad, pad), (pad, pad)],
            dimension_numbers=("NHWC", "HWIO", "NHWC"),
            preferred_element_type=jnp.float32)

    out1 = jnp.maximum(conv(xb, block.w1, block.stride, 1) * block.s1 + block.b1, 0.0)
    out1 = out1.astype(jnp.bfloat16)            # matches bf16 activation storage
    out2 = jnp.maximum(conv(out1, block.w2, 1, 1) * block.s2 + block.b2, 0.0)
    if block.has_shortcut:
        sc = conv(xb, block.ws, block.stride, 0) * block.ss + block.bs
    else:
        sc = xb.astype(jnp.float32)
    out = jnp.maximum(out2 + sc, 0.0)
    return jnp.transpose(out, (0, 3, 1, 2))


if __name__ == "__main__":
    key = jax.random.PRNGKey(0)
    configs = [
        # (N, Cin, H, W, channels, expansion, stride)
        (2, 4, 16, 16, 8, 1, 1),    # projection shortcut (channel change)
        (2, 8, 16, 16, 8, 1, 2),    # strided block (downsampling) + projection
        (2, 8, 16, 16, 8, 1, 1),    # identity shortcut
    ]
    for i, (N, Cin, H, W, ch, exp, st) in enumerate(configs):
        kx, kp = jax.random.split(jax.random.fold_in(key, i))
        x = jax.random.normal(kx, (N, Cin, H, W), jnp.float32)

        block = BasicPallas(Cin, ch, expansion=exp, stride=st, key=kp)
        y = jax.block_until_ready(block(x))
        y_ref = jax.block_until_ready(_ref_forward(block, x))

        Ho = (H + 2 - 3) // st + 1
        assert y.shape == (N, exp * ch, Ho, Ho), y.shape
        assert jnp.allclose(y, y_ref, atol=3e-2, rtol=3e-2), (
            "max abs err", float(jnp.max(jnp.abs(y - y_ref))))

    print("KERNEL_OK")
</pallas_src>

<mosaic_0001>
module attributes {stable_mosaic.version = 11 : i64} {
  func.func @_basic_kernel(%arg0: i32, %arg1: memref<1x16x64xbf16, #tpu.memory_space<vmem>>, %arg2: memref<3x64x128xbf16, #tpu.memory_space<vmem>>, %arg3: memref<1x128xf32, #tpu.memory_space<vmem>>, %arg4: memref<1x128xf32, #tpu.memory_space<vmem>>, %arg5: memref<3x128x128xbf16, #tpu.memory_space<vmem>>, %arg6: memref<1x128xf32, #tpu.memory_space<vmem>>, %arg7: memref<1x128xf32, #tpu.memory_space<vmem>>, %arg8: memref<64x128xbf16, #tpu.memory_space<vmem>>, %arg9: memref<1x128xf32, #tpu.memory_space<vmem>>, %arg10: memref<1x128xf32, #tpu.memory_space<vmem>>, %arg11: memref<1x16x128xbf16, #tpu.memory_space<vmem>>, %arg12: memref<18x64xf32, #tpu.memory_space<vmem>>, %arg13: memref<18x128xbf16, #tpu.memory_space<vmem>>) attributes {dimension_semantics = [#tpu.dimension_semantics<parallel>], iteration_bounds = array<i64: 2>, scalar_prefetch = 0 : i64, scratch_operands = 2 : i64, tpu.core_type = #tpu.core_type<tc>, window_params = [{transform_indices = @transform_0, window_bounds = array<i64: 1, 16, 64>}, {pipeline_mode = #tpu.pipeline_mode<synchronous>, transform_indices = @transform_1, window_bounds = array<i64: 3, 64, 128>}, {pipeline_mode = #tpu.pipeline_mode<synchronous>, transform_indices = @transform_2, window_bounds = array<i64: 1, 128>}, {pipeline_mode = #tpu.pipeline_mode<synchronous>, transform_indices = @transform_3, window_bounds = array<i64: 1, 128>}, {pipeline_mode = #tpu.pipeline_mode<synchronous>, transform_indices = @transform_4, window_bounds = array<i64: 3, 128, 128>}, {pipeline_mode = #tpu.pipeline_mode<synchronous>, transform_indices = @transform_5, window_bounds = array<i64: 1, 128>}, {pipeline_mode = #tpu.pipeline_mode<synchronous>, transform_indices = @transform_6, window_bounds = array<i64: 1, 128>}, {pipeline_mode = #tpu.pipeline_mode<synchronous>, transform_indices = @transform_7, window_bounds = array<i64: 64, 128>}, {pipeline_mode = #tpu.pipeline_mode<synchronous>, transform_indices = @transform_8, window_bounds = array<i64: 1, 128>}, {pipeline_mode = #tpu.pipeline_mode<synchronous>, transform_indices = @transform_9, window_bounds = array<i64: 1, 128>}, {transform_indices = @transform_10, window_bounds = array<i64: 1, 16, 128>}]} {
    %cst = arith.constant 0.000000e+00 : f32
    %0 = vector.broadcast %cst : f32 to vector<1x64xf32>
    %c0 = arith.constant 0 : index
    %c0_0 = arith.constant 0 : index
    %1 = vector.load %arg12[%c0, %c0_0] : memref<18x64xf32, #tpu.memory_space<vmem>>, vector<1x64xf32>
    tpu.vector_store %arg12[%c0, %c0_0], %0 {strides = array<i32>} : memref<18x64xf32, #tpu.memory_space<vmem>>, vector<1x64xf32>,
    %c17 = arith.constant 17 : index
    %c0_1 = arith.constant 0 : index
    %2 = vector.load %arg12[%c17, %c0_1] : memref<18x64xf32, #tpu.memory_space<vmem>>, vector<1x64xf32>
    tpu.vector_store %arg12[%c17, %c0_1], %0 {strides = array<i32>} : memref<18x64xf32, #tpu.memory_space<vmem>>, vector<1x64xf32>,
    %c0_2 = arith.constant 0 : index
    %c0_3 = arith.constant 0 : index
    %c0_4 = arith.constant 0 : index
    %3 = vector.load %arg1[%c0_2, %c0_3, %c0_4] : memref<1x16x64xbf16, #tpu.memory_space<vmem>>, vector<1x16x64xbf16>
    %4 = vector.shape_cast %3 : vector<1x16x64xbf16> to vector<16x64xbf16>
    %5 = arith.extf %4 : vector<16x64xbf16> to vector<16x64xf32>
    %c1 = arith.constant 1 : index
    %c0_5 = arith.constant 0 : index
    %6 = vector.load %arg12[%c1, %c0_5] : memref<18x64xf32, #tpu.memory_space<vmem>>, vector<16x64xf32>
    tpu.vector_store %arg12[%c1, %c0_5], %5 {strides = array<i32>} : memref<18x64xf32, #tpu.memory_space<vmem>>, vector<16x64xf32>,
    %cst_6 = arith.constant 0.000000e+00 : f32
    %7 = vector.broadcast %cst_6 : f32 to vector<16x128xf32>
    %c0_7 = arith.constant 0 : index
    %c0_8 = arith.constant 0 : index
    %8 = vector.load %arg12[%c0_7, %c0_8] : memref<18x64xf32, #tpu.memory_space<vmem>>, vector<16x64xf32>
    %9 = arith.truncf %8 : vector<16x64xf32> to vector<16x64xbf16>
    %c0_9 = arith.constant 0 : index
    %c0_10 = arith.constant 0 : index
    %c0_11 = arith.constant 0 : index
    %10 = vector.load %arg2[%c0_9, %c0_10, %c0_11] : memref<3x64x128xbf16, #tpu.memory_space<vmem>>, vector<1x64x128xbf16>
    %11 = vector.shape_cast %10 : vector<1x64x128xbf16> to vector<64x128xbf16>
    %cst_12 = arith.constant dense<0.000000e+00> : vector<16x128xf32>
    %12 = tpu.matmul %9, %11, %cst_12 {dimension_numbers = #tpu.dot_dimension_numbers<[1], [0], [0], [1], [0, 0, 1, 1], [], []>} : vector<16x64xbf16>, vector<64x128xbf16>, vector<16x128xf32> -> vector<16x128xf32>
    %13 = arith.addf %7, %12 : vector<16x128xf32>
    %c1_13 = arith.constant 1 : index
    %c0_14 = arith.constant 0 : index
    %14 = vector.load %arg12[%c1_13, %c0_14] : memref<18x64xf32, #tpu.memory_space<vmem>>, vector<16x64xf32>
    %15 = arith.truncf %14 : vector<16x64xf32> to vector<16x64xbf16>
    %c1_15 = arith.constant 1 : index
    %c0_16 = arith.constant 0 : index
    %c0_17 = arith.constant 0 : index
    %16 = vector.load %arg2[%c1_15, %c0_16, %c0_17] : memref<3x64x128xbf16, #tpu.memory_space<vmem>>, vector<1x64x128xbf16>
    %17 = vector.shape_cast %16 : vector<1x64x128xbf16> to vector<64x128xbf16>
    %cst_18 = arith.constant dense<0.000000e+00> : vector<16x128xf32>
    %18 = tpu.matmul %15, %17, %cst_18 {dimension_numbers = #tpu.dot_dimension_numbers<[1], [0], [0], [1], [0, 0, 1, 1], [], []>} : vector<16x64xbf16>, vector<64x128xbf16>, vector<16x128xf32> -> vector<16x128xf32>
    %19 = arith.addf %13, %18 : vector<16x128xf32>
    %c2 = arith.constant 2 : index
    %c0_19 = arith.constant 0 : index
    %20 = vector.load %arg12[%c2, %c0_19] : memref<18x64xf32, #tpu.memory_space<vmem>>, vector<16x64xf32>
    %21 = arith.truncf %20 : vector<16x64xf32> to vector<16x64xbf16>
    %c2_20 = arith.constant 2 : index
    %c0_21 = arith.constant 0 : index
    %c0_22 = arith.constant 0 : index
    %22 = vector.load %arg2[%c2_20, %c0_21, %c0_22] : memref<3x64x128xbf16, #tpu.memory_space<vmem>>, vector<1x64x128xbf16>
    %23 = vector.shape_cast %22 : vector<1x64x128xbf16> to vector<64x128xbf16>
    %cst_23 = arith.constant dense<0.000000e+00> : vector<16x128xf32>
    %24 = tpu.matmul %21, %23, %cst_23 {dimension_numbers = #tpu.dot_dimension_numbers<[1], [0], [0], [1], [0, 0, 1, 1], [], []>} : vector<16x64xbf16>, vector<64x128xbf16>, vector<16x128xf32> -> vector<16x128xf32>
    %25 = arith.addf %19, %24 : vector<16x128xf32>
    %c0_24 = arith.constant 0 : index
    %c0_25 = arith.constant 0 : index
    %26 = vector.load %arg3[%c0_24, %c0_25] : memref<1x128xf32, #tpu.memory_space<vmem>>, vector<1x128xf32>
    %27 = vector.broadcast %26 : vector<1x128xf32> to vector<16x128xf32>
    %28 = arith.mulf %25, %27 : vector<16x128xf32>
    %c0_26 = arith.constant 0 : index
    %c0_27 = arith.constant 0 : index
    %29 = vector.load %arg4[%c0_26, %c0_27] : memref<1x128xf32, #tpu.memory_space<vmem>>, vector<1x128xf32>
    %30 = vector.broadcast %29 : vector<1x128xf32> to vector<16x128xf32>
    %31 = arith.addf %28, %30 : vector<16x128xf32>
    %cst_28 = arith.constant 0.000000e+00 : f32
    %32 = vector.broadcast %cst_28 : f32 to vector<16x128xf32>
    %33 = arith.maximumf %31, %32 : vector<16x128xf32>
    %34 = arith.truncf %33 : vector<16x128xf32> to vector<16x128xbf16>
    %cst_29 = arith.constant 0.000000e+00 : bf16
    %35 = vector.broadcast %cst_29 : bf16 to vector<1x128xbf16>
    %c0_30 = arith.constant 0 : index
    %c0_31 = arith.constant 0 : index
    %36 = vector.load %arg13[%c0_30, %c0_31] : memref<18x128xbf16, #tpu.memory_space<vmem>>, vector<1x128xbf16>
    tpu.vector_store %arg13[%c0_30, %c0_31], %35 {strides = array<i32>} : memref<18x128xbf16, #tpu.memory_space<vmem>>, vector<1x128xbf16>,
    %c17_32 = arith.constant 17 : index
    %c0_33 = arith.constant 0 : index
    %37 = vector.load %arg13[%c17_32, %c0_33] : memref<18x128xbf16, #tpu.memory_space<vmem>>, vector<1x128xbf16>
    tpu.vector_store %arg13[%c17_32, %c0_33], %35 {strides = array<i32>} : memref<18x128xbf16, #tpu.memory_space<vmem>>, vector<1x128xbf16>,
    %c1_34 = arith.constant 1 : index
    %c0_35 = arith.constant 0 : index
    %38 = vector.load %arg13[%c1_34, %c0_35] : memref<18x128xbf16, #tpu.memory_space<vmem>>, vector<16x128xbf16>
    tpu.vector_store %arg13[%c1_34, %c0_35], %34 {strides = array<i32>} : memref<18x128xbf16, #tpu.memory_space<vmem>>, vector<16x128xbf16>,
    %cst_36 = arith.constant 0.000000e+00 : f32
    %39 = vector.broadcast %cst_36 : f32 to vector<16x128xf32>
    %c0_37 = arith.constant 0 : index
    %c0_38 = arith.constant 0 : index
    %40 = vector.load %arg13[%c0_37, %c0_38] : memref<18x128xbf16, #tpu.memory_space<vmem>>, vector<16x128xbf16>
    %c0_39 = arith.constant 0 : index
    %c0_40 = arith.constant 0 : index
    %c0_41 = arith.constant 0 : index
    %41 = vector.load %arg5[%c0_39, %c0_40, %c0_41] : memref<3x128x128xbf16, #tpu.memory_space<vmem>>, vector<1x128x128xbf16>
    %42 = vector.shape_cast %41 : vector<1x128x128xbf16> to vector<128x128xbf16>
    %cst_42 = arith.constant dense<0.000000e+00> : vector<16x128xf32>
    %43 = tpu.matmul %40, %42, %cst_42 {dimension_numbers = #tpu.dot_dimension_numbers<[1], [0], [0], [1], [0, 0, 1, 1], [], []>} : vector<16x128xbf16>, vector<128x128xbf16>, vector<16x128xf32> -> vector<16x128xf32>
    %44 = arith.addf %39, %43 : vector<16x128xf32>
    %c1_43 = arith.constant 1 : index
    %c0_44 = arith.constant 0 : index
    %45 = vector.load %arg13[%c1_43, %c0_44] : memref<18x128xbf16, #tpu.memory_space<vmem>>, vector<16x128xbf16>
    %c1_45 = arith.constant 1 : index
    %c0_46 = arith.constant 0 : index
    %c0_47 = arith.constant 0 : index
    %46 = vector.load %arg5[%c1_45, %c0_46, %c0_47] : memref<3x128x128xbf16, #tpu.memory_space<vmem>>, vector<1x128x128xbf16>
    %47 = vector.shape_cast %46 : vector<1x128x128xbf16> to vector<128x128xbf16>
    %cst_48 = arith.constant dense<0.000000e+00> : vector<16x128xf32>
    %48 = tpu.matmul %45, %47, %cst_48 {dimension_numbers = #tpu.dot_dimension_numbers<[1], [0], [0], [1], [0, 0, 1, 1], [], []>} : vector<16x128xbf16>, vector<128x128xbf16>, vector<16x128xf32> -> vector<16x128xf32>
    %49 = arith.addf %44, %48 : vector<16x128xf32>
    %c2_49 = arith.constant 2 : index
    %c0_50 = arith.constant 0 : index
    %50 = vector.load %arg13[%c2_49, %c0_50] : memref<18x128xbf16, #tpu.memory_space<vmem>>, vector<16x128xbf16>
    %c2_51 = arith.constant 2 : index
    %c0_52 = arith.constant 0 : index
    %c0_53 = arith.constant 0 : index
    %51 = vector.load %arg5[%c2_51, %c0_52, %c0_53] : memref<3x128x128xbf16, #tpu.memory_space<vmem>>, vector<1x128x128xbf16>
    %52 = vector.shape_cast %51 : vector<1x128x128xbf16> to vector<128x128xbf16>
    %cst_54 = arith.constant dense<0.000000e+00> : vector<16x128xf32>
    %53 = tpu.matmul %50, %52, %cst_54 {dimension_numbers = #tpu.dot_dimension_numbers<[1], [0], [0], [1], [0, 0, 1, 1], [], []>} : vector<16x128xbf16>, vector<128x128xbf16>, vector<16x128xf32> -> vector<16x128xf32>
    %54 = arith.addf %49, %53 : vector<16x128xf32>
    %c0_55 = arith.constant 0 : index
    %c0_56 = arith.constant 0 : index
    %55 = vector.load %arg6[%c0_55, %c0_56] : memref<1x128xf32, #tpu.memory_space<vmem>>, vector<1x128xf32>
    %56 = vector.broadcast %55 : vector<1x128xf32> to vector<16x128xf32>
    %57 = arith.mulf %54, %56 : vector<16x128xf32>
    %c0_57 = arith.constant 0 : index
    %c0_58 = arith.constant 0 : index
    %58 = vector.load %arg7[%c0_57, %c0_58] : memref<1x128xf32, #tpu.memory_space<vmem>>, vector<1x128xf32>
    %59 = vector.broadcast %58 : vector<1x128xf32> to vector<16x128xf32>
    %60 = arith.addf %57, %59 : vector<16x128xf32>
    %cst_59 = arith.constant 0.000000e+00 : f32
    %61 = vector.broadcast %cst_59 : f32 to vector<16x128xf32>
    %62 = arith.maximumf %60, %61 : vector<16x128xf32>
    %c1_60 = arith.constant 1 : index
    %c0_61 = arith.constant 0 : index
    %63 = vector.load %arg12[%c1_60, %c0_61] : memref<18x64xf32, #tpu.memory_space<vmem>>, vector<16x64xf32>
    %64 = arith.truncf %63 : vector<16x64xf32> to vector<16x64xbf16>
    %c0_62 = arith.constant 0 : index
    %c0_63 = arith.constant 0 : index
    %65 = vector.load %arg8[%c0_62, %c0_63] : memref<64x128xbf16, #tpu.memory_space<vmem>>, vector<64x128xbf16>
    %cst_64 = arith.constant dense<0.000000e+00> : vector<16x128xf32>
    %66 = tpu.matmul %64, %65, %cst_64 {dimension_numbers = #tpu.dot_dimension_numbers<[1], [0], [0], [1], [0, 0, 1, 1], [], []>} : vector<16x64xbf16>, vector<64x128xbf16>, vector<16x128xf32> -> vector<16x128xf32>
    %c0_65 = arith.constant 0 : index
    %c0_66 = arith.constant 0 : index
    %67 = vector.load %arg9[%c0_65, %c0_66] : memref<1x128xf32, #tpu.memory_space<vmem>>, vector<1x128xf32>
    %68 = vector.broadcast %67 : vector<1x128xf32> to vector<16x128xf32>
    %69 = arith.mulf %66, %68 : vector<16x128xf32>
    %c0_67 = arith.constant 0 : index
    %c0_68 = arith.constant 0 : index
    %70 = vector.load %arg10[%c0_67, %c0_68] : memref<1x128xf32, #tpu.memory_space<vmem>>, vector<1x128xf32>
    %71 = vector.broadcast %70 : vector<1x128xf32> to vector<16x128xf32>
    %72 = arith.addf %69, %71 : vector<16x128xf32>
    %73 = arith.addf %62, %72 : vector<16x128xf32>
    %cst_69 = arith.constant 0.000000e+00 : f32
    %74 = vector.broadcast %cst_69 : f32 to vector<16x128xf32>
    %75 = arith.maximumf %73, %74 : vector<16x128xf32>
    %76 = arith.truncf %75 : vector<16x128xf32> to vector<16x128xbf16>
    %c0_70 = arith.constant 0 : index
    %c0_71 = arith.constant 0 : index
    %c0_72 = arith.constant 0 : index
    %77 = vector.load %arg11[%c0_70, %c0_71, %c0_72] : memref<1x16x128xbf16, #tpu.memory_space<vmem>>, vector<1x16x128xbf16>
    %78 = vector.shape_cast %77 : vector<1x16x128xbf16> to vector<16x128xbf16>
    %79 = vector.shape_cast %76 : vector<16x128xbf16> to vector<1x16x128xbf16>
    tpu.vector_store %arg11[%c0_70, %c0_71, %c0_72], %79 {strides = array<i32>} : memref<1x16x128xbf16, #tpu.memory_space<vmem>>, vector<1x16x128xbf16>,
    return
  }
  func.func @transform_0(%arg0: i32) -> (i32, i32, i32) {
    %c0_i32 = arith.constant 0 : i32
    %c0_i32_0 = arith.constant 0 : i32
    %c0_i32_1 = arith.constant 0 : i32
    return %arg0, %c0_i32, %c0_i32_0 : i32, i32, i32
  }
  func.func @transform_1(%arg0: i32) -> (i32, i32, i32) {
    %c0_i32 = arith.constant 0 : i32
    %c0_i32_0 = arith.constant 0 : i32
    %c0_i32_1 = arith.constant 0 : i32
    %c0_i32_2 = arith.constant 0 : i32
    return %c0_i32, %c0_i32_0, %c0_i32_1 : i32, i32, i32
  }
  func.func @transform_2(%arg0: i32) -> (i32, i32) {
    %c0_i32 = arith.constant 0 : i32
    %c0_i32_0 = arith.constant 0 : i32
    %c0_i32_1 = arith.constant 0 : i32
    return %c0_i32, %c0_i32_0 : i32, i32
  }
  func.func @transform_3(%arg0: i32) -> (i32, i32) {
    %c0_i32 = arith.constant 0 : i32
    %c0_i32_0 = arith.constant 0 : i32
    %c0_i32_1 = arith.constant 0 : i32
    return %c0_i32, %c0_i32_0 : i32, i32
  }
  func.func @transform_4(%arg0: i32) -> (i32, i32, i32) {
    %c0_i32 = arith.constant 0 : i32
    %c0_i32_0 = arith.constant 0 : i32
    %c0_i32_1 = arith.constant 0 : i32
    %c0_i32_2 = arith.constant 0 : i32
    return %c0_i32, %c0_i32_0, %c0_i32_1 : i32, i32, i32
  }
  func.func @transform_5(%arg0: i32) -> (i32, i32) {
    %c0_i32 = arith.constant 0 : i32
    %c0_i32_0 = arith.constant 0 : i32
    %c0_i32_1 = arith.constant 0 : i32
    return %c0_i32, %c0_i32_0 : i32, i32
  }
  func.func @transform_6(%arg0: i32) -> (i32, i32) {
    %c0_i32 = arith.constant 0 : i32
    %c0_i32_0 = arith.constant 0 : i32
    %c0_i32_1 = arith.constant 0 : i32
    return %c0_i32, %c0_i32_0 : i32, i32
  }
  func.func @transform_7(%arg0: i32) -> (i32, i32) {
    %c0_i32 = arith.constant 0 : i32
    %c0_i32_0 = arith.constant 0 : i32
    %c0_i32_1 = arith.constant 0 : i32
    return %c0_i32, %c0_i32_0 : i32, i32
  }
  func.func @transform_8(%arg0: i32) -> (i32, i32) {
    %c0_i32 = arith.constant 0 : i32
    %c0_i32_0 = arith.constant 0 : i32
    %c0_i32_1 = arith.constant 0 : i32
    return %c0_i32, %c0_i32_0 : i32, i32
  }
  func.func @transform_9(%arg0: i32) -> (i32, i32) {
    %c0_i32 = arith.constant 0 : i32
    %c0_i32_0 = arith.constant 0 : i32
    %c0_i32_1 = arith.constant 0 : i32
    return %c0_i32, %c0_i32_0 : i32, i32
  }
  func.func @transform_10(%arg0: i32) -> (i32, i32, i32) {
    %c0_i32 = arith.constant 0 : i32
    %c0_i32_0 = arith.constant 0 : i32
    %c0_i32_1 = arith.constant 0 : i32
    return %arg0, %c0_i32, %c0_i32_0 : i32, i32, i32
  }
}

</mosaic_0001>

<llo_original>
// kernel: fwd.1
$region0: #{fwd.1}
  #allocation0 [shape = 'u32[]', space=smem, size = 0x4, offset = 0x4, fixed_abs, tag = 'smem constant byte address 0x4 - core index']
  #allocation1 [shape = 'u32[144,128]{1,0:T(1,128)}', space=vmem, size = 0x12000, scoped, tag = 'internal scratch']
  #allocation2 [shape = 'f32[18,64]{1,0:T(8,128)}', space=vmem, size = 0x3000, scoped, tag = 'scratch operand']
  #allocation3 [shape = 'bf16[18,128]{1,0:T(8,128)(2,1)}', space=vmem, size = 0x1800, scoped, tag = 'scratch operand']
  %s0 = inlined_call_operand.vmem [shape: bf16[2,16,64], index: 0, kind: input, shape index: {}]
  %s1 = inlined_call_operand.vmem [shape: bf16[3,64,128], index: 1, kind: input, shape index: {}]
  %s2 = inlined_call_operand.vmem [shape: f32[1,128], index: 2, kind: input, shape index: {}]
  %s3 = inlined_call_operand.vmem [shape: f32[1,128], index: 3, kind: input, shape index: {}]
  %s4 = inlined_call_operand.vmem [shape: bf16[3,128,128], index: 4, kind: input, shape index: {}]
  %s5 = inlined_call_operand.vmem [shape: f32[1,128], index: 5, kind: input, shape index: {}]
  %s6 = inlined_call_operand.vmem [shape: f32[1,128], index: 6, kind: input, shape index: {}]
  %s7 = inlined_call_operand.vmem [shape: bf16[64,128], index: 7, kind: input, shape index: {}]
  %s8 = inlined_call_operand.vmem [shape: f32[1,128], index: 8, kind: input, shape index: {}]
  %s9 = inlined_call_operand.vmem [shape: f32[1,128], index: 9, kind: input, shape index: {}]
  %s10 = inlined_call_operand.vmem [shape: bf16[2,16,128], index: 10, kind: output, shape index: {}]
  %s11 = sld [smem:[#allocation0]]
  $region73: #{fwd.1} parent=0
    _
  %s13 = ssub.s32 1, %s11
  %s14 = scalar_select 0, %s13, %s11
  loop: start=0, step=1, limit=4
  $region2: #{fwd.1} parent=0 // loop_pre_header
    _
  $region3: #{fwd.1} parent=0 // loop_header
    %s16 = sphi 0, %s20
    %p17 = scmp.ge.s32.totalorder %s16, 4
    %s26 = sphi 0, %s28
    %s29 = sphi 0, %s26
    %s30 = sphi 0, %s29
    %s46 = sphi 0, %s30
    %s50 = sphi 0, %s50
    %s52 = sphi 0, %s50
    %s53 = sphi 0, %s52
    %s67 = sphi 0, %s53
    %s71 = sphi 0, %s71
    %s73 = sphi 0, %s71
    %s74 = sphi 0, %s73
    %s88 = sphi 0, %s74
    %s92 = sphi 0, %s92
    %s94 = sphi 0, %s92
    %s95 = sphi 0, %s94
    %s109 = sphi 0, %s95
    %s113 = sphi 0, %s113
    %s115 = sphi 0, %s113
    %s116 = sphi 0, %s115
    %s130 = sphi 0, %s116
    %s134 = sphi 0, %s134
    %s136 = sphi 0, %s134
    %s137 = sphi 0, %s136
    %s151 = sphi 0, %s137
    %s155 = sphi 0, %s155
    %s157 = sphi 0, %s155
    %s158 = sphi 0, %s157
    %s172 = sphi 0, %s158
    %s176 = sphi 0, %s176
    %s178 = sphi 0, %s176
    %s179 = sphi 0, %s178
    %s193 = sphi 0, %s179
    %s197 = sphi 0, %s197
    %s199 = sphi 0, %s197
    %s200 = sphi 0, %s199
    %s214 = sphi 0, %s200
    %s218 = sphi 0, %s218
    %s220 = sphi 0, %s218
    %s221 = sphi 0, %s220
    %s235 = sphi 0, %s221
    %s241 = sphi 0, %s243
    %s244 = sphi 0, %s241
    %s245 = sphi 0, %s244
    %s261 = sphi 0, %s245
  $region4: #{fwd.1} parent=0 // loop_header_branch
    %19 = sbr.rel (%p17) target = $region8
  $region5: #{fwd.1} parent=0 // loop_body
    %s21 = ssub.s32 %s16, 1
    %s22 = ssub.s32 %s16, 2
    %s23 = sadd.s32 %s16, 1
    %s24 = ssub.s32 %s16, %s23
    %p25 = scmp.eq.s32.totalorder %s24, 0
    %s27 = sadd.s32 %s26, 1
    %s28 = scalar_select %p25, %s26, %s27
    %p31 = pneg %p25
    %p32 = scmp.eq.s32.totalorder %s16, 1
    %p33 = por %p31, %p32
    %p34 = scmp.ne.s32.totalorder %s26, %s29
    %p35 = scmp.eq.s32.totalorder %s16, 0
    %p36 = por %p34, %p35
    %p37 = scmp.ne.s32.totalorder %s26, %s29
    %p38 = scmp.eq.s32.totalorder %s21, 1
    %p39 = por %p37, %p38
    %p40 = scmp.ne.s32.totalorder %s29, %s30
    %p41 = scmp.eq.s32.totalorder %s21, 0
    %p42 = por %p40, %p41
    %p43 = scmp.ne.s32.totalorder %s29, %s30
    %p44 = scmp.eq.s32.totalorder %s22, 1
    %p45 = por %p43, %p44
    %p47 = scmp.ne.s32.totalorder %s30, %s46
    %p48 = scmp.eq.s32.totalorder %s22, 0
    %p49 = por %p47, %p48
    %s51 = sadd.s32 %s50, 1
    %p54 = scmp.eq.s32.totalorder %s16, 1
    %p55 = scmp.ne.s32.totalorder %s50, %s52
    %p56 = scmp.eq.s32.totalorder %s16, 0
    %p57 = por %p55, %p56
    %p58 = scmp.ne.s32.totalorder %s50, %s52
    %p59 = scmp.eq.s32.totalorder %s21, 1
    %p60 = por %p58, %p59
    %p61 = scmp.ne.s32.totalorder %s52, %s53
    %p62 = scmp.eq.s32.totalorder %s21, 0
    %p63 = por %p61, %p62
    %p64 = scmp.ne.s32.totalorder %s52, %s53
    %p65 = scmp.eq.s32.totalorder %s22, 1
    %p66 = por %p64, %p65
    %p68 = scmp.ne.s32.totalorder %s53, %s67
    %p69 = scmp.eq.s32.totalorder %s22, 0
    %p70 = por %p68, %p69
    %s72 = sadd.s32 %s71, 1
    %p75 = scmp.eq.s32.totalorder %s16, 1
    %p76 = scmp.ne.s32.totalorder %s71, %s73
    %p77 = scmp.eq.s32.totalorder %s16, 0
    %p78 = por %p76, %p77
    %p79 = scmp.ne.s32.totalorder %s71, %s73
    %p80 = scmp.eq.s32.totalorder %s21, 1
    %p81 = por %p79, %p80
    %p82 = scmp.ne.s32.totalorder %s73, %s74
    %p83 = scmp.eq.s32.totalorder %s21, 0
    %p84 = por %p82, %p83
    %p85 = scmp.ne.s32.totalorder %s73, %s74
    %p86 = scmp.eq.s32.totalorder %s22, 1
    %p87 = por %p85, %p86
    %p89 = scmp.ne.s32.totalorder %s74, %s88
    %p90 = scmp.eq.s32.totalorder %s22, 0
    %p91 = por %p89, %p90
    %s93 = sadd.s32 %s92, 1
    %p96 = scmp.eq.s32.totalorder %s16, 1
    %p97 = scmp.ne.s32.totalorder %s92, %s94
    %p98 = scmp.eq.s32.totalorder %s16, 0
    %p99 = por %p97, %p98
    %p100 = scmp.ne.s32.totalorder %s92, %s94
    %p101 = scmp.eq.s32.totalorder %s21, 1
    %p102 = por %p100, %p101
    %p103 = scmp.ne.s32.totalorder %s94, %s95
    %p104 = scmp.eq.s32.totalorder %s21, 0
    %p105 = por %p103, %p104
    %p106 = scmp.ne.s32.totalorder %s94, %s95
    %p107 = scmp.eq.s32.totalorder %s22, 1
    %p108 = por %p106, %p107
    %p110 = scmp.ne.s32.totalorder %s95, %s109
    %p111 = scmp.eq.s32.totalorder %s22, 0
    %p112 = por %p110, %p111
    %s114 = sadd.s32 %s113, 1
    %p117 = scmp.eq.s32.totalorder %s16, 1
    %p118 = scmp.ne.s32.totalorder %s113, %s115
    %p119 = scmp.eq.s32.totalorder %s16, 0
    %p120 = por %p118, %p119
    %p121 = scmp.ne.s32.totalorder %s113, %s115
    %p122 = scmp.eq.s32.totalorder %s21, 1
    %p123 = por %p121, %p122
    %p124 = scmp.ne.s32.totalorder %s115, %s116
    %p125 = scmp.eq.s32.totalorder %s21, 0
    %p126 = por %p124, %p125
    %p127 = scmp.ne.s32.totalorder %s115, %s116
    %p128 = scmp.eq.s32.totalorder %s22, 1
    %p129 = por %p127, %p128
    %p131 = scmp.ne.s32.totalorder %s116, %s130
    %p132 = scmp.eq.s32.totalorder %s22, 0
    %p133 = por %p131, %p132
    %s135 = sadd.s32 %s134, 1
    %p138 = scmp.eq.s32.totalorder %s16, 1
    %p139 = scmp.ne.s32.totalorder %s134, %s136
    %p140 = scmp.eq.s32.totalorder %s16, 0
    %p141 = por %p139, %p140
    %p142 = scmp.ne.s32.totalorder %s134, %s136
    %p143 = scmp.eq.s32.totalorder %s21, 1
    %p144 = por %p142, %p143
    %p145 = scmp.ne.s32.totalorder %s136, %s137
    %p146 = scmp.eq.s32.totalorder %s21, 0
    %p147 = por %p145, %p146
    %p148 = scmp.ne.s32.totalorder %s136, %s137
    %p149 = scmp.eq.s32.totalorder %s22, 1
    %p150 = por %p148, %p149
    %p152 = scmp.ne.s32.totalorder %s137, %s151
    %p153 = scmp.eq.s32.totalorder %s22, 0
    %p154 = por %p152, %p153
    %s156 = sadd.s32 %s155, 1
    %p159 = scmp.eq.s32.totalorder %s16, 1
    %p160 = scmp.ne.s32.totalorder %s155, %s157
    %p161 = scmp.eq.s32.totalorder %s16, 0
    %p162 = por %p160, %p161
    %p163 = scmp.ne.s32.totalorder %s155, %s157
    %p164 = scmp.eq.s32.totalorder %s21, 1
    %p165 = por %p163, %p164
    %p166 = scmp.ne.s32.totalorder %s157, %s158
    %p167 = scmp.eq.s32.totalorder %s21, 0
    %p168 = por %p166, %p167
    %p169 = scmp.ne.s32.totalorder %s157, %s158
    %p170 = scmp.eq.s32.totalorder %s22, 1
    %p171 = por %p169, %p170
    %p173 = scmp.ne.s32.totalorder %s158, %s172
    %p174 = scmp.eq.s32.totalorder %s22, 0
    %p175 = por %p173, %p174
    %s177 = sadd.s32 %s176, 1
    %p180 = scmp.eq.s32.totalorder %s16, 1
    %p181 = scmp.ne.s32.totalorder %s176, %s178
    %p182 = scmp.eq.s32.totalorder %s16, 0
    %p183 = por %p181, %p182
    %p184 = scmp.ne.s32.totalorder %s176, %s178
    %p185 = scmp.eq.s32.totalorder %s21, 1
    %p186 = por %p184, %p185
    %p187 = scmp.ne.s32.totalorder %s178, %s179
    %p188 = scmp.eq.s32.totalorder %s21, 0
    %p189 = por %p187, %p188
    %p190 = scmp.ne.s32.totalorder %s178, %s179
    %p191 = scmp.eq.s32.totalorder %s22, 1
    %p192 = por %p190, %p191
    %p194 = scmp.ne.s32.totalorder %s179, %s193
    %p195 = scmp.eq.s32.totalorder %s22, 0
    %p196 = por %p194, %p195
    %s198 = sadd.s32 %s197, 1
    %p201 = scmp.eq.s32.totalorder %s16, 1
    %p202 = scmp.ne.s32.totalorder %s197, %s199
    %p203 = scmp.eq.s32.totalorder %s16, 0
    %p204 = por %p202, %p203
    %p205 = scmp.ne.s32.totalorder %s197, %s199
    %p206 = scmp.eq.s32.totalorder %s21, 1
    %p207 = por %p205, %p206
    %p208 = scmp.ne.s32.totalorder %s199, %s200
    %p209 = scmp.eq.s32.totalorder %s21, 0
    %p210 = por %p208, %p209
    %p211 = scmp.ne.s32.totalorder %s199, %s200
    %p212 = scmp.eq.s32.totalorder %s22, 1
    %p213 = por %p211, %p212
    %p215 = scmp.ne.s32.totalorder %s200, %s214
    %p216 = scmp.eq.s32.totalorder %s22, 0
    %p217 = por %p215, %p216
    %s219 = sadd.s32 %s218, 1
    %p222 = scmp.eq.s32.totalorder %s16, 1
    %p223 = scmp.ne.s32.totalorder %s218, %s220
    %p224 = scmp.eq.s32.totalorder %s16, 0
    %p225 = por %p223, %p224
    %p226 = scmp.ne.s32.totalorder %s218, %s220
    %p227 = scmp.eq.s32.totalorder %s21, 1
    %p228 = por %p226, %p227
    %p229 = scmp.ne.s32.totalorder %s220, %s221
    %p230 = scmp.eq.s32.totalorder %s21, 0
    %p231 = por %p229, %p230
    %p232 = scmp.ne.s32.totalorder %s220, %s221
    %p233 = scmp.eq.s32.totalorder %s22, 1
    %p234 = por %p232, %p233
    %p236 = scmp.ne.s32.totalorder %s221, %s235
    %p237 = scmp.eq.s32.totalorder %s22, 0
    %p238 = por %p236, %p237
    %s239 = ssub.s32 %s16, %s23
    %p240 = scmp.eq.s32.totalorder %s239, 0
    %s242 = sadd.s32 %s241, 1
    %s243 = scalar_select %p240, %s241, %s242
    %p246 = pneg %p240
    %p247 = scmp.eq.s32.totalorder %s16, 1
    %p248 = por %p246, %p247
    %p249 = scmp.ne.s32.totalorder %s241, %s244
    %p250 = scmp.eq.s32.totalorder %s16, 0
    %p251 = por %p249, %p250
    %p252 = scmp.ne.s32.totalorder %s241, %s244
    %p253 = scmp.eq.s32.totalorder %s21, 1
    %p254 = por %p252, %p253
    %p255 = scmp.ne.s32.totalorder %s244, %s245
    %p256 = scmp.eq.s32.totalorder %s21, 0
    %p257 = por %p255, %p256
    %p258 = scmp.ne.s32.totalorder %s244, %s245
    %p259 = scmp.eq.s32.totalorder %s22, 1
    %p260 = por %p258, %p259
    %p262 = scmp.ne.s32.totalorder %s245, %s261
    %p263 = scmp.eq.s32.totalorder %s22, 0
    %p264 = por %p262, %p263
    %p265 = scmp.le.s32.totalorder 1, %s16
    %p266 = scmp.lt.s32.totalorder %s16, 3
    %p267 = pnand %p265, %p266
    %p268 = pneg %p267
    // Predicated region
    $region9: #{fwd.1} parent=5 // pred_check
      _
    $region10: #{fwd.1} parent=5 // pred_check_branch
      %270 = sbr.rel (%p267) target = $region12
    $region11: #{fwd.1} parent=5 // pred_region
      %s271 = ssub.s32 %s16, 1
      // Predicated region
      $region13: #{fwd.1} parent=11 // pred_check
        %p272 = pneg %p63
      $region14: #{fwd.1} parent=11 // pred_check_branch
        %274 = sbr.rel (%p272) target = $region16
      $region15: #{fwd.1} parent=11 // pred_region
        _
      $region16: #{fwd.1} parent=11 // pred_fallthru
        _
      // Predicated region
      $region17: #{fwd.1} parent=11 // pred_check
        %p275 = pneg %p84
      $region18: #{fwd.1} parent=11 // pred_check_branch
        %277 = sbr.rel (%p275) target = $region20
      $region19: #{fwd.1} parent=11 // pred_region
        _
      $region20: #{fwd.1} parent=11 // pred_fallthru
        _
      // Predicated region
      $region21: #{fwd.1} parent=11 // pred_check
        %p278 = pneg %p105
      $region22: #{fwd.1} parent=11 // pred_check_branch
        %280 = sbr.rel (%p278) target = $region24
      $region23: #{fwd.1} parent=11 // pred_region
        _
      $region24: #{fwd.1} parent=11 // pred_fallthru
        _
      // Predicated region
      $region25: #{fwd.1} parent=11 // pred_check
        %p281 = pneg %p126
      $region26: #{fwd.1} parent=11 // pred_check_branch
        %283 = sbr.rel (%p281) target = $region28
      $region27: #{fwd.1} parent=11 // pred_region
        _
      $region28: #{fwd.1} parent=11 // pred_fallthru
        _
      // Predicated region
      $region29: #{fwd.1} parent=11 // pred_check
        %p284 = pneg %p147
      $region30: #{fwd.1} parent=11 // pred_check_branch
        %286 = sbr.rel (%p284) target = $region32
      $region31: #{fwd.1} parent=11 // pred_region
        _
      $region32: #{fwd.1} parent=11 // pred_fallthru
        _
      // Predicated region
      $region33: #{fwd.1} parent=11 // pred_check
        %p287 = pneg %p168
      $region34: #{fwd.1} parent=11 // pred_check_branch
        %289 = sbr.rel (%p287) target = $region36
      $region35: #{fwd.1} parent=11 // pred_region
        _
      $region36: #{fwd.1} parent=11 // pred_fallthru
        _
      // Predicated region
      $region37: #{fwd.1} parent=11 // pred_check
        %p290 = pneg %p189
      $region38: #{fwd.1} parent=11 // pred_check_branch
        %292 = sbr.rel (%p290) target = $region40
      $region39: #{fwd.1} parent=11 // pred_region
        _
      $region40: #{fwd.1} parent=11 // pred_fallthru
        _
      // Predicated region
      $region41: #{fwd.1} parent=11 // pred_check
        %p293 = pneg %p210
      $region42: #{fwd.1} parent=11 // pred_check_branch
        %295 = sbr.rel (%p293) target = $region44
      $region43: #{fwd.1} parent=11 // pred_region
        _
      $region44: #{fwd.1} parent=11 // pred_fallthru
        _
      // Predicated region
      $region45: #{fwd.1} parent=11 // pred_check
        %p296 = pneg %p231
      $region46: #{fwd.1} parent=11 // pred_check_branch
        %298 = sbr.rel (%p296) target = $region48
      $region47: #{fwd.1} parent=11 // pred_region
        _
      $region48: #{fwd.1} parent=11 // pred_fallthru
        _
    $region12: #{fwd.1} parent=5 // pred_fallthru
      _
    %p299 = scmp.lt.s32.totalorder %s16, 2
    // Predicated region
    $region49: #{fwd.1} parent=5 // pred_check
      %p300 = pneg %p299
    $region50: #{fwd.1} parent=5 // pred_check_branch
      %302 = sbr.rel (%p300) target = $region52
    $region51: #{fwd.1} parent=5 // pred_region
      // Predicated region
      $region53: #{fwd.1} parent=51 // pred_check
        %p303 = pneg %p36
      $region54: #{fwd.1} parent=51 // pred_check_branch
        %305 = sbr.rel (%p303) target = $region56
      $region55: #{fwd.1} parent=51 // pred_region
        %p306 = scmp.lt.s32.totalorder %s16, 1
        %s307 = scalar_select %p306, %s16, 1
        %s308 = smul.addr %s307, 2
        %s309 = smul.addr %s308, 4
        %s310 = scalar_lea.vmem %s0, %s309
      $region56: #{fwd.1} parent=51 // pred_fallthru
        _
    $region52: #{fwd.1} parent=5 // pred_fallthru
      _
    %p311 = scmp.le.s32.totalorder 1, %s16
    %p312 = scmp.lt.s32.totalorder %s16, 3
    %p313 = pnand %p311, %p312
    %p314 = pneg %p313
    // Predicated region
    $region57: #{fwd.1} parent=5 // pred_check
      _
    $region58: #{fwd.1} parent=5 // pred_check_branch
      %316 = sbr.rel (%p313) target = $region60
    $region59: #{fwd.1} parent=5 // pred_region
      %s317 = ssub.s32 %s16, 1
      %p318 = scmp.lt.s32.totalorder %s21, 1
      %s319 = scalar_select %p318, %s21, 1
      %s320 = smul.addr %s319, 2
      %s321 = smul.addr %s320, 4
      %s322 = scalar_lea.vmem %s0, %s321
      %p323 = pneg %p42
      %p324 = pneg %p39
      %p325 = pneg %p63
      %p326 = pneg %p60
      %p327 = pneg %p84
      %p328 = pneg %p81
      %p329 = pneg %p105
      %p330 = pneg %p102
      %p331 = pneg %p126
      %p332 = pneg %p123
      %p333 = pneg %p147
      %p334 = pneg %p144
      %p335 = pneg %p168
      %p336 = pneg %p165
      %p337 = pneg %p189
      %p338 = pneg %p186
      %p339 = pneg %p210
      %p340 = pneg %p207
      %p341 = pneg %p231
      %p342 = pneg %p228
      %p343 = pneg %p257
      %p344 = pneg %p254
      %p345 = scmp.lt.s32.totalorder %s21, 1
      %s346 = scalar_select %p345, %s21, 1
      %s347 = smul.addr %s346, 2
      %s348 = smul.addr %s347, 4
      %s349 = scalar_lea.vmem %s10, %s348
      %p350 = scmp.lt.s32.totalorder %s21, 1
      %s351 = scalar_select %p350, %s21, 1
      %s352 = smul.addr %s351, 2
      %s353 = smul.addr %s352, 4
      %s354 = scalar_lea.vmem %s0, %s353
      %p355 = scmp.lt.s32.totalorder %s21, 1
      %s356 = scalar_select %p355, %s21, 1
      %s357 = smul.addr %s356, 2
      %s358 = smul.addr %s357, 4
      %s359 = scalar_lea.vmem %s10, %s358
      %vm361 = vcmask 516096
      %362 = vst.msk [vmem:[#allocation2] sm:$0x1] %vm361, 0.0
      %363 = vst.msk [vmem:[#allocation2 + $0x11] sm:$0x1] %vm361, 0.0
      %v364 = vld [vmem:[%s354] sm:$0xf]
      %v365 = vld [vmem:[%s354 + $0x4] sm:$0xf]
      %v366 = vunpack.c.l.bf16 %v364
      %v367 = vunpack.c.l.bf16 %v365
      %vm368 = vcmask 523264
      %369 = vst.msk [vmem:[#allocation2 + $0x1] sm:$0xff] %vm368, %v366
      %370 = vst.msk [vmem:[#allocation2 + $0x9] sm:$0xff] %vm368, %v367
      %v371 = vld [vmem:[#allocation2] sm:$0xff]
      %v372 = vld [vmem:[#allocation2 + $0x8] sm:$0xff]
      %v373 = vpack.c.bf16 %v372, %v371
      %v374 = vld [vmem:[%s1] sm:$0xf]
      %v375 = vld [vmem:[%s1 + $0x4] sm:$0xf]
      %v376 = vld [vmem:[%s1 + $0x8] sm:$0xf]
      %v377 = vld [vmem:[%s1 + $0xc] sm:$0xf]
      %v378 = vld [vmem:[%s1 + $0x10] sm:$0xf]
      %v379 = vld [vmem:[%s1 + $0x14] sm:$0xf]
      %v380 = vld [vmem:[%s1 + $0x18] sm:$0xf]
      %v381 = vld [vmem:[%s1 + $0x1c] sm:$0xf]
      %v382 = vld [vmem:[#allocation2 + $0x1] sm:$0xff]
      %v383 = vld [vmem:[#allocation2 + $0x9] sm:$0xff]
      %v384 = vpack.c.bf16 %v383, %v382
      %s385 = scalar_lea.vmem %s1, 32
      %v386 = vld [vmem:[%s385] sm:$0xf]
      %v387 = vld [vmem:[%s385 + $0x4] sm:$0xf]
      %v388 = vld [vmem:[%s385 + $0x8] sm:$0xf]
      %v389 = vld [vmem:[%s385 + $0xc] sm:$0xf]
      %v390 = vld [vmem:[%s385 + $0x10] sm:$0xf]
      %v391 = vld [vmem:[%s385 + $0x14] sm:$0xf]
      %v392 = vld [vmem:[%s385 + $0x18] sm:$0xf]
      %v393 = vld [vmem:[%s385 + $0x1c] sm:$0xf]
      %v402 = vunpack.c.l.b16 %v386
      %v403 = vunpack.c.l.b16 %v387
      %v404 = vunpack.c.l.b16 %v388
      %v405 = vunpack.c.l.b16 %v389
      %v406 = vunpack.c.l.b16 %v390
      %v407 = vunpack.c.l.b16 %v391
      %v408 = vunpack.c.l.b16 %v392
      %v409 = vunpack.c.l.b16 %v393
      %v410 = vpack.c.b16 %v403, %v402
      %v411 = vpack.c.b16 %v405, %v404
      %v412 = vpack.c.b16 %v407, %v406
      %v413 = vpack.c.b16 %v409, %v408
      %v419 = vsel %vm368, %v384, 0
      %421 = vmatprep.subr.bf16.mxu0 0
      %422 = vmatpush1.bf16.msra.mxu0 0
      %423 = vmatprep.subr.bf16.mxu0 0
      %424 = vmatpush1.bf16.msra.mxu0 0
      %425 = vmatprep.subr.bf16.mxu0 0
      %426 = vmatpush1.bf16.msra.mxu0 0
      %427 = vmatprep.subr.bf16.mxu0 0
      %428 = vmatpush1.bf16.msra.mxu0 0
      %429 = vmatprep.subr.bf16.mxu0 0
      %430 = vmatpush1.bf16.msra.mxu0 %v413
      %431 = vmatprep.subr.bf16.mxu0 0
      %432 = vmatpush1.bf16.msra.mxu0 %v412
      %433 = vmatprep.subr.bf16.mxu0 0
      %434 = vmatpush1.bf16.msra.mxu0 %v411
      %435 = vmatprep.subr.bf16.mxu0 0
      %436 = vmatpush1.bf16.msra.mxu0 %v410
      %437 = vmatprep.subr.bf16.mxu0 0
      %438 = vmatpush2.bf16.msra.mxu0 0
      %439 = vmatprep.subr.bf16.mxu0 0
      %440 = vmatpush2.bf16.msra.mxu0 0
      %441 = vmatprep.subr.bf16.mxu0 0
      %442 = vmatpush2.bf16.msra.mxu0 0
      %443 = vmatprep.subr.bf16.mxu0 0
      %444 = vmatpush2.bf16.msra.mxu0 0
      %445 = vmatprep.subr.bf16.mxu0 0
      %446 = vmatpush2.bf16.msra.mxu0 0
      %447 = vmatprep.subr.bf16.mxu0 0
      %448 = vmatpush2.bf16.msra.mxu0 0
      %449 = vmatprep.subr.bf16.mxu0 0
      %450 = vmatpush2.bf16.msra.mxu0 0
      %451 = vmatprep.subr.bf16.mxu0 0
      %452 = vmatpush2.bf16.msra.mxu0 0
      %453 = vmatprep.mubr.bf16.mxu0 0
      %454 = vmatmul.mubr.bf16.gmra.mxu0 %v419
      %v455 = vpop.f32.mrf.mxu0
      %v456 = vadd.f32 0.0, %v455
      %v457 = vpop.f32.mrf.mxu0
      %v458 = vpop.f32.mrf.mxu0
      %v459 = vadd.f32 0.0, %v458
      %v460 = vpop.f32.mrf.mxu0
      %461 = vdwg.mxu0
      %v470 = vunpack.c.l.b16 %v374
      %v471 = vunpack.c.l.b16 %v375
      %v472 = vunpack.c.l.b16 %v376
      %v473 = vunpack.c.l.b16 %v377
      %v474 = vunpack.c.l.b16 %v378
      %v475 = vunpack.c.l.b16 %v379
      %v476 = vunpack.c.l.b16 %v380
      %v477 = vunpack.c.l.b16 %v381
      %v478 = vpack.c.b16 %v471, %v470
      %v479 = vpack.c.b16 %v473, %v472
      %v480 = vpack.c.b16 %v475, %v474
      %v481 = vpack.c.b16 %v477, %v476
      %v487 = vsel %vm368, %v373, 0
      %489 = vmatprep.subr.bf16.mxu0 0
      %490 = vmatpush1.bf16.msra.mxu0 0
      %491 = vmatprep.subr.bf16.mxu0 0
      %492 = vmatpush1.bf16.msra.mxu0 0
      %493 = vmatprep.subr.bf16.mxu0 0
      %494 = vmatpush1.bf16.msra.mxu0 0
      %495 = vmatprep.subr.bf16.mxu0 0
      %496 = vmatpush1.bf16.msra.mxu0 0
      %497 = vmatprep.subr.bf16.mxu0 0
      %498 = vmatpush1.bf16.msra.mxu0 %v481
      %499 = vmatprep.subr.bf16.mxu0 0
      %500 = vmatpush1.bf16.msra.mxu0 %v480
      %501 = vmatprep.subr.bf16.mxu0 0
      %502 = vmatpush1.bf16.msra.mxu0 %v479
      %503 = vmatprep.subr.bf16.mxu0 0
      %504 = vmatpush1.bf16.msra.mxu0 %v478
      %505 = vmatprep.subr.bf16.mxu0 0
      %506 = vmatpush2.bf16.msra.mxu0 0
      %507 = vmatprep.subr.bf16.mxu0 0
      %508 = vmatpush2.bf16.msra.mxu0 0
      %509 = vmatprep.subr.bf16.mxu0 0
      %510 = vmatpush2.bf16.msra.mxu0 0
      %511 = vmatprep.subr.bf16.mxu0 0
      %512 = vmatpush2.bf16.msra.mxu0 0
      %513 = vmatprep.subr.bf16.mxu0 0
      %514 = vmatpush2.bf16.msra.mxu0 0
      %515 = vmatprep.subr.bf16.mxu0 0
      %516 = vmatpush2.bf16.msra.mxu0 0
      %517 = vmatprep.subr.bf16.mxu0 0
      %518 = vmatpush2.bf16.msra.mxu0 0
      %519 = vmatprep.subr.bf16.mxu0 0
      %520 = vmatpush2.bf16.msra.mxu0 0
      %521 = vmatprep.mubr.bf16.mxu0 0
      %522 = vmatmul.mubr.bf16.gmra.mxu0 %v487
      %v523 = vpop.f32.mrf.mxu0
      %v524 = vadd.f32 %v456, %v523
      %v525 = vpop.f32.mrf.mxu0
      %v526 = vpop.f32.mrf.mxu0
      %v527 = vadd.f32 %v459, %v526
      %v528 = vpop.f32.mrf.mxu0
      %529 = vdwg.mxu0
      %v530 = vld [vmem:[#allocation2 + $0x2] sm:$0xff]
      %v531 = vld [vmem:[#allocation2 + $0xa] sm:$0xff]
      %v532 = vpack.c.bf16 %v531, %v530
      %s533 = scalar_lea.vmem %s1, 64
      %v534 = vld [vmem:[%s533] sm:$0xf]
      %v535 = vld [vmem:[%s533 + $0x4] sm:$0xf]
      %v536 = vld [vmem:[%s533 + $0x8] sm:$0xf]
      %v537 = vld [vmem:[%s533 + $0xc] sm:$0xf]
      %v538 = vld [vmem:[%s533 + $0x10] sm:$0xf]
      %v539 = vld [vmem:[%s533 + $0x14] sm:$0xf]
      %v540 = vld [vmem:[%s533 + $0x18] sm:$0xf]
      %v541 = vld [vmem:[%s533 + $0x1c] sm:$0xf]
      %v550 = vunpack.c.l.b16 %v534
      %v551 = vunpack.c.l.b16 %v535
      %v552 = vunpack.c.l.b16 %v536
      %v553 = vunpack.c.l.b16 %v537
      %v554 = vunpack.c.l.b16 %v538
      %v555 = vunpack.c.l.b16 %v539
      %v556 = vunpack.c.l.b16 %v540
      %v557 = vunpack.c.l.b16 %v541
      %v558 = vpack.c.b16 %v551, %v550
      %v559 = vpack.c.b16 %v553, %v552
      %v560 = vpack.c.b16 %v555, %v554
      %v561 = vpack.c.b16 %v557, %v556
      %v567 = vsel %vm368, %v532, 0
      %569 = vmatprep.subr.bf16.mxu0 0
      %570 = vmatpush1.bf16.msra.mxu0 0
      %571 = vmatprep.subr.bf16.mxu0 0
      %572 = vmatpush1.bf16.msra.mxu0 0
      %573 = vmatprep.subr.bf16.mxu0 0
      %574 = vmatpush1.bf16.msra.mxu0 0
      %575 = vmatprep.subr.bf16.mxu0 0
      %576 = vmatpush1.bf16.msra.mxu0 0
      %577 = vmatprep.subr.bf16.mxu0 0
      %578 = vmatpush1.bf16.msra.mxu0 %v561
      %579 = vmatprep.subr.bf16.mxu0 0
      %580 = vmatpush1.bf16.msra.mxu0 %v560
      %581 = vmatprep.subr.bf16.mxu0 0
      %582 = vmatpush1.bf16.msra.mxu0 %v559
      %583 = vmatprep.subr.bf16.mxu0 0
      %584 = vmatpush1.bf16.msra.mxu0 %v558
      %585 = vmatprep.subr.bf16.mxu0 0
      %586 = vmatpush2.bf16.msra.mxu0 0
      %587 = vmatprep.subr.bf16.mxu0 0
      %588 = vmatpush2.bf16.msra.mxu0 0
      %589 = vmatprep.subr.bf16.mxu0 0
      %590 = vmatpush2.bf16.msra.mxu0 0
      %591 = vmatprep.subr.bf16.mxu0 0
      %592 = vmatpush2.bf16.msra.mxu0 0
      %593 = vmatprep.subr.bf16.mxu0 0
      %594 = vmatpush2.bf16.msra.mxu0 0
      %595 = vmatprep.subr.bf16.mxu0 0
      %596 = vmatpush2.bf16.msra.mxu0 0
      %597 = vmatprep.subr.bf16.mxu0 0
      %598 = vmatpush2.bf16.msra.mxu0 0
      %599 = vmatprep.subr.bf16.mxu0 0
      %600 = vmatpush2.bf16.msra.mxu0 0
      %601 = vmatprep.mubr.bf16.mxu0 0
      %602 = vmatmul.mubr.bf16.gmra.mxu0 %v567
      %v603 = vpop.f32.mrf.mxu0
      %v604 = vadd.f32 0.0, %v603
      %v605 = vpop.f32.mrf.mxu0
      %v606 = vpop.f32.mrf.mxu0
      %v607 = vadd.f32 0.0, %v606
      %v608 = vpop.f32.mrf.mxu0
      %609 = vdwg.mxu0
      %v610 = vadd.f32 %v524, %v604
      %v611 = vadd.f32 %v527, %v607
      %v612 = vld [vmem:[%s2] sm:$0x1]
      %v614 = vlaneseq
      %v615 = vshrl.u32 %v614, 7
      %v616 = vsub.s32 0, %v615
      %v617 = vrot.slane %v612, %v616
      %v619 = vmul.f32 %v610, %v617
      %v620 = vmul.f32 %v611, %v617
      %v621 = vld [vmem:[%s3] sm:$0x1]
      %v623 = vlaneseq
      %v624 = vshrl.u32 %v623, 7
      %v625 = vsub.s32 0, %v624
      %v626 = vrot.slane %v621, %v625
      %v628 = vadd.f32 %v619, %v626
      %v629 = vadd.f32 %v620, %v626
      %v630 = vmax.f32 %v628, 0.0
      %v631 = vmax.f32 %v629, 0.0
      %v632 = vpack.c.bf16 %v631, %v630
      %vm633 = vcmask 1040384
      %vm634 = vsmask.f32 256
      %vm635 = vmand %vm633, %vm634
      %v636 = vld [vmem:[#allocation3] sm:$0x1]
      %v637 = vsel %vm635, 0, %v636
      %638 = vst [vmem:[#allocation3] sm:$0x1] %v637
      %vm639 = vsmask.f32 7938
      %vm640 = vmand %vm633, %vm639
      %v641 = vld [vmem:[#allocation3 + $0x8] sm:$0x1]
      %v642 = vsel %vm640, 0, %v641
      %643 = vst [vmem:[#allocation3 + $0x8] sm:$0x1] %v642
      %v645 = vunpack.c.l.b16 %v632
      %v646 = vunpack.c.h.b16 %v632
      %v647 = vpack.c.b16 %v645, %v645
      %v648 = vpack.c.b16 %v646, %v646
      %vm649 = vsmask.f32 4368
      %vm650 = vmor %vm634, %vm649
      %v652 = vshrl.u32 %v647, 16
      %v654 = vrot.slane %v652, 7
      %v655 = vshll.u32 %v647, 16
      %v657 = vor.u32 %v654, %v655
      %v658 = vrot.slane %v654, 4
      %v660 = vshrl.u32 %v648, 16
      %v662 = vrot.slane %v660, 7
      %v663 = vshll.u32 %v648, 16
      %v665 = vor.u32 %v662, %v663
      %v666 = vsel %vm650, %v658, %v665
      %v667 = vrot.slane %v662, 4
      %vm671 = vcmask 1043456
      %vm672 = vmand %vm671, %vm639
      %v673 = vld [vmem:[#allocation3] sm:$0xf]
      %v674 = vsel %vm672, %v657, %v673
      %675 = vst [vmem:[#allocation3] sm:$0xf] %v674
      %676 = vst [vmem:[#allocation3 + $0x4] sm:$0xf] %v666
      %v677 = vld [vmem:[#allocation3 + $0x8] sm:$0x1]
      %v678 = vsel %vm635, %v667, %v677
      %679 = vst [vmem:[#allocation3 + $0x8] sm:$0x1] %v678
      %v680 = vld [vmem:[#allocation3] sm:$0xf]
      %v681 = vld [vmem:[#allocation3 + $0x4] sm:$0xf]
      %v682 = vld [vmem:[%s4] sm:$0xf]
      %v683 = vld [vmem:[%s4 + $0x4] sm:$0xf]
      %v684 = vld [vmem:[%s4 + $0x8] sm:$0xf]
      %v685 = vld [vmem:[%s4 + $0xc] sm:$0xf]
      %v686 = vld [vmem:[%s4 + $0x10] sm:$0xf]
      %v687 = vld [vmem:[%s4 + $0x14] sm:$0xf]
      %v688 = vld [vmem:[%s4 + $0x18] sm:$0xf]
      %v689 = vld [vmem:[%s4 + $0x1c] sm:$0xf]
      %v690 = vld [vmem:[%s4 + $0x20] sm:$0xf]
      %v691 = vld [vmem:[%s4 + $0x24] sm:$0xf]
      %v692 = vld [vmem:[%s4 + $0x28] sm:$0xf]
      %v693 = vld [vmem:[%s4 + $0x2c] sm:$0xf]
      %v694 = vld [vmem:[%s4 + $0x30] sm:$0xf]
      %v695 = vld [vmem:[%s4 + $0x34] sm:$0xf]
      %v696 = vld [vmem:[%s4 + $0x38] sm:$0xf]
      %v697 = vld [vmem:[%s4 + $0x3c] sm:$0xf]
      %v698 = vld [vmem:[#allocation3 + $0x8] sm:$0x1]
      %s699 = scalar_lea.vmem %s4, 64
      %v700 = vld [vmem:[%s699] sm:$0xf]
      %v701 = vld [vmem:[%s699 + $0x4] sm:$0xf]
      %v702 = vld [vmem:[%s699 + $0x8] sm:$0xf]
      %v703 = vld [vmem:[%s699 + $0xc] sm:$0xf]
      %v704 = vld [vmem:[%s699 + $0x10] sm:$0xf]
      %v705 = vld [vmem:[%s699 + $0x14] sm:$0xf]
      %v706 = vld [vmem:[%s699 + $0x18] sm:$0xf]
      %v707 = vld [vmem:[%s699 + $0x1c] sm:$0xf]
      %v708 = vld [vmem:[%s699 + $0x20] sm:$0xf]
      %v709 = vld [vmem:[%s699 + $0x24] sm:$0xf]
      %v710 = vld [vmem:[%s699 + $0x28] sm:$0xf]
      %v711 = vld [vmem:[%s699 + $0x2c] sm:$0xf]
      %v712 = vld [vmem:[%s699 + $0x30] sm:$0xf]
      %v713 = vld [vmem:[%s699 + $0x34] sm:$0xf]
      %v714 = vld [vmem:[%s699 + $0x38] sm:$0xf]
      %v715 = vld [vmem:[%s699 + $0x3c] sm:$0xf]
      %v719 = vunpack.c.l.b16 %v680
      %v720 = vunpack.c.l.b16 %v681
      %v721 = vunpack.c.l.b16 %v698
      %v722 = vpack.c.b16 %v720, %v719
      %v723 = vpack.c.b16 %v721, %v721
      %vm724 = vsmask.f32 7424
      %v726 = vshrl.u32 %v722, 16
      %v728 = vshll.u32 %v722, 16
      %v730 = vrot.slane %v728, 1
      %v731 = vor.u32 %v726, %v730
      %v733 = vshll.u32 %v723, 16
      %v735 = vrot.slane %v733, 1
      %v736 = vsel %vm724, %v731, %v735
      %v754 = vunpack.c.l.b16 %v700
      %v755 = vunpack.c.l.b16 %v701
      %v756 = vunpack.c.l.b16 %v702
      %v757 = vunpack.c.l.b16 %v703
      %v758 = vunpack.c.l.b16 %v704
      %v759 = vunpack.c.l.b16 %v705
      %v760 = vunpack.c.l.b16 %v706
      %v761 = vunpack.c.l.b16 %v707
      %v762 = vunpack.c.l.b16 %v708
      %v763 = vunpack.c.l.b16 %v709
      %v764 = vunpack.c.l.b16 %v710
      %v765 = vunpack.c.l.b16 %v711
      %v766 = vunpack.c.l.b16 %v712
      %v767 = vunpack.c.l.b16 %v713
      %v768 = vunpack.c.l.b16 %v714
      %v769 = vunpack.c.l.b16 %v715
      %v770 = vpack.c.b16 %v755, %v754
      %v771 = vpack.c.b16 %v757, %v756
      %v772 = vpack.c.b16 %v759, %v758
      %v773 = vpack.c.b16 %v761, %v760
      %v774 = vpack.c.b16 %v763, %v762
      %v775 = vpack.c.b16 %v765, %v764
      %v776 = vpack.c.b16 %v767, %v766
      %v777 = vpack.c.b16 %v769, %v768
      %786 = vmatprep.subr.bf16.mxu0 0
      %787 = vmatpush1.bf16.msra.mxu0 %v777
      %788 = vmatprep.subr.bf16.mxu0 0
      %789 = vmatpush1.bf16.msra.mxu0 %v776
      %790 = vmatprep.subr.bf16.mxu0 0
      %791 = vmatpush1.bf16.msra.mxu0 %v775
      %792 = vmatprep.subr.bf16.mxu0 0
      %793 = vmatpush1.bf16.msra.mxu0 %v774
      %794 = vmatprep.subr.bf16.mxu0 0
      %795 = vmatpush1.bf16.msra.mxu0 %v773
      %796 = vmatprep.subr.bf16.mxu0 0
      %797 = vmatpush1.bf16.msra.mxu0 %v772
      %798 = vmatprep.subr.bf16.mxu0 0
      %799 = vmatpush1.bf16.msra.mxu0 %v771
      %800 = vmatprep.subr.bf16.mxu0 0
      %801 = vmatpush1.bf16.msra.mxu0 %v770
      %802 = vmatprep.subr.bf16.mxu0 0
      %803 = vmatpush2.bf16.msra.mxu0 0
      %804 = vmatprep.subr.bf16.mxu0 0
      %805 = vmatpush2.bf16.msra.mxu0 0
      %806 = vmatprep.subr.bf16.mxu0 0
      %807 = vmatpush2.bf16.msra.mxu0 0
      %808 = vmatprep.subr.bf16.mxu0 0
      %809 = vmatpush2.bf16.msra.mxu0 0
      %810 = vmatprep.subr.bf16.mxu0 0
      %811 = vmatpush2.bf16.msra.mxu0 0
      %812 = vmatprep.subr.bf16.mxu0 0
      %813 = vmatpush2.bf16.msra.mxu0 0
      %814 = vmatprep.subr.bf16.mxu0 0
      %815 = vmatpush2.bf16.msra.mxu0 0
      %816 = vmatprep.subr.bf16.mxu0 0
      %817 = vmatpush2.bf16.msra.mxu0 0
      %818 = vmatprep.mubr.bf16.mxu0 0
      %819 = vmatmul.mubr.bf16.gmra.mxu0 %v736
      %v820 = vpop.f32.mrf.mxu0
      %v821 = vadd.f32 0.0, %v820
      %v822 = vpop.f32.mrf.mxu0
      %v823 = vpop.f32.mrf.mxu0
      %v824 = vadd.f32 0.0, %v823
      %v825 = vpop.f32.mrf.mxu0
      %826 = vdwg.mxu0
      %v844 = vunpack.c.l.b16 %v682
      %v845 = vunpack.c.l.b16 %v683
      %v846 = vunpack.c.l.b16 %v684
      %v847 = vunpack.c.l.b16 %v685
      %v848 = vunpack.c.l.b16 %v686
      %v849 = vunpack.c.l.b16 %v687
      %v850 = vunpack.c.l.b16 %v688
      %v851 = vunpack.c.l.b16 %v689
      %v852 = vunpack.c.l.b16 %v690
      %v853 = vunpack.c.l.b16 %v691
      %v854 = vunpack.c.l.b16 %v692
      %v855 = vunpack.c.l.b16 %v693
      %v856 = vunpack.c.l.b16 %v694
      %v857 = vunpack.c.l.b16 %v695
      %v858 = vunpack.c.l.b16 %v696
      %v859 = vunpack.c.l.b16 %v697
      %v860 = vpack.c.b16 %v845, %v844
      %v861 = vpack.c.b16 %v847, %v846
      %v862 = vpack.c.b16 %v849, %v848
      %v863 = vpack.c.b16 %v851, %v850
      %v864 = vpack.c.b16 %v853, %v852
      %v865 = vpack.c.b16 %v855, %v854
      %v866 = vpack.c.b16 %v857, %v856
      %v867 = vpack.c.b16 %v859, %v858
      %876 = vmatprep.subr.bf16.mxu0 0
      %877 = vmatpush1.bf16.msra.mxu0 %v867
      %878 = vmatprep.subr.bf16.mxu0 0
      %879 = vmatpush1.bf16.msra.mxu0 %v866
      %880 = vmatprep.subr.bf16.mxu0 0
      %881 = vmatpush1.bf16.msra.mxu0 %v865
      %882 = vmatprep.subr.bf16.mxu0 0
      %883 = vmatpush1.bf16.msra.mxu0 %v864
      %884 = vmatprep.subr.bf16.mxu0 0
      %885 = vmatpush1.bf16.msra.mxu0 %v863
      %886 = vmatprep.subr.bf16.mxu0 0
      %887 = vmatpush1.bf16.msra.mxu0 %v862
      %888 = vmatprep.subr.bf16.mxu0 0
      %889 = vmatpush1.bf16.msra.mxu0 %v861
      %890 = vmatprep.subr.bf16.mxu0 0
      %891 = vmatpush1.bf16.msra.mxu0 %v860
      %892 = vmatprep.subr.bf16.mxu0 0
      %893 = vmatpush2.bf16.msra.mxu0 0
      %894 = vmatprep.subr.bf16.mxu0 0
      %895 = vmatpush2.bf16.msra.mxu0 0
      %896 = vmatprep.subr.bf16.mxu0 0
      %897 = vmatpush2.bf16.msra.mxu0 0
      %898 = vmatprep.subr.bf16.mxu0 0
      %899 = vmatpush2.bf16.msra.mxu0 0
      %900 = vmatprep.subr.bf16.mxu0 0
      %901 = vmatpush2.bf16.msra.mxu0 0
      %902 = vmatprep.subr.bf16.mxu0 0
      %903 = vmatpush2.bf16.msra.mxu0 0
      %904 = vmatprep.subr.bf16.mxu0 0
      %905 = vmatpush2.bf16.msra.mxu0 0
      %906 = vmatprep.subr.bf16.mxu0 0
      %907 = vmatpush2.bf16.msra.mxu0 0
      %908 = vmatprep.mubr.bf16.mxu0 0
      %909 = vmatmul.mubr.bf16.gmra.mxu0 %v722
      %v910 = vpop.f32.mrf.mxu0
      %v911 = vadd.f32 %v821, %v910
      %v912 = vpop.f32.mrf.mxu0
      %v913 = vpop.f32.mrf.mxu0
      %v914 = vadd.f32 %v824, %v913
      %v915 = vpop.f32.mrf.mxu0
      %916 = vdwg.mxu0
      %v917 = vld [vmem:[#allocation3] sm:$0xe]
      %s918 = scalar_lea.vmem %s4, 128
      %v919 = vld [vmem:[%s918] sm:$0xf]
      %v920 = vld [vmem:[%s918 + $0x4] sm:$0xf]
      %v921 = vld [vmem:[%s918 + $0x8] sm:$0xf]
      %v922 = vld [vmem:[%s918 + $0xc] sm:$0xf]
      %v923 = vld [vmem:[%s918 + $0x10] sm:$0xf]
      %v924 = vld [vmem:[%s918 + $0x14] sm:$0xf]
      %v925 = vld [vmem:[%s918 + $0x18] sm:$0xf]
      %v926 = vld [vmem:[%s918 + $0x1c] sm:$0xf]
      %v927 = vld [vmem:[%s918 + $0x20] sm:$0xf]
      %v928 = vld [vmem:[%s918 + $0x24] sm:$0xf]
      %v929 = vld [vmem:[%s918 + $0x28] sm:$0xf]
      %v930 = vld [vmem:[%s918 + $0x2c] sm:$0xf]
      %v931 = vld [vmem:[%s918 + $0x30] sm:$0xf]
      %v932 = vld [vmem:[%s918 + $0x34] sm:$0xf]
      %v933 = vld [vmem:[%s918 + $0x38] sm:$0xf]
      %v934 = vld [vmem:[%s918 + $0x3c] sm:$0xf]
      %v936 = vunpack.c.l.b16 %v917
      %v937 = vpack.c.b16 %v720, %v936
      %vm938 = vcmask 1046528
      %v939 = vrot.slane %v937, 1
      %v940 = vrot.slane %v723, 1
      %v941 = vsel %vm938, %v939, %v940
      %v959 = vunpack.c.l.b16 %v919
      %v960 = vunpack.c.l.b16 %v920
      %v961 = vunpack.c.l.b16 %v921
      %v962 = vunpack.c.l.b16 %v922
      %v963 = vunpack.c.l.b16 %v923
      %v964 = vunpack.c.l.b16 %v924
      %v965 = vunpack.c.l.b16 %v925
      %v966 = vunpack.c.l.b16 %v926
      %v967 = vunpack.c.l.b16 %v927
      %v968 = vunpack.c.l.b16 %v928
      %v969 = vunpack.c.l.b16 %v929
      %v970 = vunpack.c.l.b16 %v930
      %v971 = vunpack.c.l.b16 %v931
      %v972 = vunpack.c.l.b16 %v932
      %v973 = vunpack.c.l.b16 %v933
      %v974 = vunpack.c.l.b16 %v934
      %v975 = vpack.c.b16 %v960, %v959
      %v976 = vpack.c.b16 %v962, %v961
      %v977 = vpack.c.b16 %v964, %v963
      %v978 = vpack.c.b16 %v966, %v965
      %v979 = vpack.c.b16 %v968, %v967
      %v980 = vpack.c.b16 %v970, %v969
      %v981 = vpack.c.b16 %v972, %v971
      %v982 = vpack.c.b16 %v974, %v973
      %991 = vmatprep.subr.bf16.mxu0 0
      %992 = vmatpush1.bf16.msra.mxu0 %v982
      %993 = vmatprep.subr.bf16.mxu0 0
      %994 = vmatpush1.bf16.msra.mxu0 %v981
      %995 = vmatprep.subr.bf16.mxu0 0
      %996 = vmatpush1.bf16.msra.mxu0 %v980
      %997 = vmatprep.subr.bf16.mxu0 0
      %998 = vmatpush1.bf16.msra.mxu0 %v979
      %999 = vmatprep.subr.bf16.mxu0 0
      %1000 = vmatpush1.bf16.msra.mxu0 %v978
      %1001 = vmatprep.subr.bf16.mxu0 0
      %1002 = vmatpush1.bf16.msra.mxu0 %v977
      %1003 = vmatprep.subr.bf16.mxu0 0
      %1004 = vmatpush1.bf16.msra.mxu0 %v976
      %1005 = vmatprep.subr.bf16.mxu0 0
      %1006 = vmatpush1.bf16.msra.mxu0 %v975
      %1007 = vmatprep.subr.bf16.mxu0 0
      %1008 = vmatpush2.bf16.msra.mxu0 0
      %1009 = vmatprep.subr.bf16.mxu0 0
      %1010 = vmatpush2.bf16.msra.mxu0 0
      %1011 = vmatprep.subr.bf16.mxu0 0
      %1012 = vmatpush2.bf16.msra.mxu0 0
      %1013 = vmatprep.subr.bf16.mxu0 0
      %1014 = vmatpush2.bf16.msra.mxu0 0
      %1015 = vmatprep.subr.bf16.mxu0 0
      %1016 = vmatpush2.bf16.msra.mxu0 0
      %1017 = vmatprep.subr.bf16.mxu0 0
      %1018 = vmatpush2.bf16.msra.mxu0 0
      %1019 = vmatprep.subr.bf16.mxu0 0
      %1020 = vmatpush2.bf16.msra.mxu0 0
      %1021 = vmatprep.subr.bf16.mxu0 0
      %1022 = vmatpush2.bf16.msra.mxu0 0
      %1023 = vmatprep.mubr.bf16.mxu0 0
      %1024 = vmatmul.mubr.bf16.gmra.mxu0 %v941
      %v1025 = vpop.f32.mrf.mxu0
      %v1026 = vadd.f32 0.0, %v1025
      %v1027 = vpop.f32.mrf.mxu0
      %v1028 = vpop.f32.mrf.mxu0
      %v1029 = vadd.f32 0.0, %v1028
      %v1030 = vpop.f32.mrf.mxu0
      %1031 = vdwg.mxu0
      %v1032 = vadd.f32 %v911, %v1026
      %v1033 = vadd.f32 %v914, %v1029
      %v1034 = vld [vmem:[%s5] sm:$0x1]
      %v1036 = vlaneseq
      %v1037 = vshrl.u32 %v1036, 7
      %v1038 = vsub.s32 0, %v1037
      %v1039 = vrot.slane %v1034, %v1038
      %v1041 = vmul.f32 %v1032, %v1039
      %v1042 = vmul.f32 %v1033, %v1039
      %v1043 = vld [vmem:[%s6] sm:$0x1]
      %v1045 = vlaneseq
      %v1046 = vshrl.u32 %v1045, 7
      %v1047 = vsub.s32 0, %v1046
      %v1048 = vrot.slane %v1043, %v1047
      %v1050 = vadd.f32 %v1041, %v1048
      %v1051 = vadd.f32 %v1042, %v1048
      %v1052 = vmax.f32 %v1050, 0.0
      %v1053 = vmax.f32 %v1051, 0.0
      %v1054 = vld [vmem:[#allocation2 + $0x1] sm:$0xff]
      %v1055 = vld [vmem:[#allocation2 + $0x9] sm:$0xff]
      %v1056 = vpack.c.bf16 %v1055, %v1054
      %v1057 = vld [vmem:[%s7] sm:$0xf]
      %v1058 = vld [vmem:[%s7 + $0x4] sm:$0xf]
      %v1059 = vld [vmem:[%s7 + $0x8] sm:$0xf]
      %v1060 = vld [vmem:[%s7 + $0xc] sm:$0xf]
      %v1061 = vld [vmem:[%s7 + $0x10] sm:$0xf]
      %v1062 = vld [vmem:[%s7 + $0x14] sm:$0xf]
      %v1063 = vld [vmem:[%s7 + $0x18] sm:$0xf]
      %v1064 = vld [vmem:[%s7 + $0x1c] sm:$0xf]
      %v1073 = vunpack.c.l.b16 %v1057
      %v1074 = vunpack.c.l.b16 %v1058
      %v1075 = vunpack.c.l.b16 %v1059
      %v1076 = vunpack.c.l.b16 %v1060
      %v1077 = vunpack.c.l.b16 %v1061
      %v1078 = vunpack.c.l.b16 %v1062
      %v1079 = vunpack.c.l.b16 %v1063
      %v1080 = vunpack.c.l.b16 %v1064
      %v1081 = vpack.c.b16 %v1074, %v1073
      %v1082 = vpack.c.b16 %v1076, %v1075
      %v1083 = vpack.c.b16 %v1078, %v1077
      %v1084 = vpack.c.b16 %v1080, %v1079
      %v1090 = vsel %vm368, %v1056, 0
      %1092 = vmatprep.subr.bf16.mxu0 0
      %1093 = vmatpush1.bf16.msra.mxu0 0
      %1094 = vmatprep.subr.bf16.mxu0 0
      %1095 = vmatpush1.bf16.msra.mxu0 0
      %1096 = vmatprep.subr.bf16.mxu0 0
      %1097 = vmatpush1.bf16.msra.mxu0 0
      %1098 = vmatprep.subr.bf16.mxu0 0
      %1099 = vmatpush1.bf16.msra.mxu0 0
      %1100 = vmatprep.subr.bf16.mxu0 0
      %1101 = vmatpush1.bf16.msra.mxu0 %v1084
      %1102 = vmatprep.subr.bf16.mxu0 0
      %1103 = vmatpush1.bf16.msra.mxu0 %v1083
      %1104 = vmatprep.subr.bf16.mxu0 0
      %1105 = vmatpush1.bf16.msra.mxu0 %v1082
      %1106 = vmatprep.subr.bf16.mxu0 0
      %1107 = vmatpush1.bf16.msra.mxu0 %v1081
      %1108 = vmatprep.subr.bf16.mxu0 0
      %1109 = vmatpush2.bf16.msra.mxu0 0
      %1110 = vmatprep.subr.bf16.mxu0 0
      %1111 = vmatpush2.bf16.msra.mxu0 0
      %1112 = vmatprep.subr.bf16.mxu0 0
      %1113 = vmatpush2.bf16.msra.mxu0 0
      %1114 = vmatprep.subr.bf16.mxu0 0
      %1115 = vmatpush2.bf16.msra.mxu0 0
      %1116 = vmatprep.subr.bf16.mxu0 0
      %1117 = vmatpush2.bf16.msra.mxu0 0
      %1118 = vmatprep.subr.bf16.mxu0 0
      %1119 = vmatpush2.bf16.msra.mxu0 0
      %1120 = vmatprep.subr.bf16.mxu0 0
      %1121 = vmatpush2.bf16.msra.mxu0 0
      %1122 = vmatprep.subr.bf16.mxu0 0
      %1123 = vmatpush2.bf16.msra.mxu0 0
      %1124 = vmatprep.mubr.bf16.mxu0 0
      %1125 = vmatmul.mubr.bf16.gmra.mxu0 %v1090
      %v1126 = vpop.f32.mrf.mxu0
      %v1127 = vadd.f32 0.0, %v1126
      %v1128 = vpop.f32.mrf.mxu0
      %v1129 = vpop.f32.mrf.mxu0
      %v1130 = vadd.f32 0.0, %v1129
      %v1131 = vpop.f32.mrf.mxu0
      %1132 = vdwg.mxu0
      %v1133 = vld [vmem:[%s8] sm:$0x1]
      %v1135 = vlaneseq
      %v1136 = vshrl.u32 %v1135, 7
      %v1137 = vsub.s32 0, %v1136
      %v1138 = vrot.slane %v1133, %v1137
      %v1140 = vmul.f32 %v1127, %v1138
      %v1141 = vmul.f32 %v1130, %v1138
      %v1142 = vld [vmem:[%s9] sm:$0x1]
      %v1144 = vlaneseq
      %v1145 = vshrl.u32 %v1144, 7
      %v1146 = vsub.s32 0, %v1145
      %v1147 = vrot.slane %v1142, %v1146
      %v1149 = vadd.f32 %v1140, %v1147
      %v1150 = vadd.f32 %v1141, %v1147
      %v1151 = vadd.f32 %v1052, %v1149
      %v1152 = vadd.f32 %v1053, %v1150
      %v1153 = vmax.f32 %v1151, 0.0
      %v1154 = vmax.f32 %v1152, 0.0
      %v1155 = vpack.c.bf16 %v1154, %v1153
      %v1157 = vunpack.c.l.b16 %v1155
      %v1158 = vunpack.c.h.b16 %v1155
      %v1159 = vpack.c.b16 %v1157, %v1157
      %v1160 = vpack.c.b16 %v1158, %v1158
      %1163 = vst [vmem:[%s359] sm:$0xf] %v1159
      %1164 = vst [vmem:[%s359 + $0x4] sm:$0xf] %v1160
      %p1165 = scmp.lt.s32.totalorder %s21, 1
      %s1166 = scalar_select %p1165, %s21, 1
      %s1167 = smul.addr %s1166, 2
      %s1168 = smul.addr %s1167, 4
      %s1169 = scalar_lea.vmem %s10, %s1168
      // Predicated region
      $region61: #{fwd.1} parent=59 // pred_check
        %p1170 = pneg %p254
      $region62: #{fwd.1} parent=59 // pred_check_branch
        %1172 = sbr.rel (%p1170) target = $region64
      $region63: #{fwd.1} parent=59 // pred_region
        _
      $region64: #{fwd.1} parent=59 // pred_fallthru
        _
    $region60: #{fwd.1} parent=5 // pred_fallthru
      _
    %p1173 = scmp.le.s32.totalorder 2, %s16
    // Predicated region
    $region65: #{fwd.1} parent=5 // pred_check
      %p1174 = pneg %p1173
    $region66: #{fwd.1} parent=5 // pred_check_branch
      %1176 = sbr.rel (%p1174) target = $region68
    $region67: #{fwd.1} parent=5 // pred_region
      %s1177 = ssub.s32 %s16, 2
      // Predicated region
      $region69: #{fwd.1} parent=67 // pred_check
        %p1178 = pneg %p260
      $region70: #{fwd.1} parent=67 // pred_check_branch
        %1180 = sbr.rel (%p1178) target = $region72
      $region71: #{fwd.1} parent=67 // pred_region
        %p1181 = scmp.lt.s32.totalorder %s22, 1
        %s1182 = scalar_select %p1181, %s22, 1
        %s1183 = smul.addr %s1182, 2
        %s1184 = smul.addr %s1183, 4
        %s1185 = scalar_lea.vmem %s10, %s1184
      $region72: #{fwd.1} parent=67 // pred_fallthru
        _
    $region68: #{fwd.1} parent=5 // pred_fallthru
      _
  $region6: #{fwd.1} parent=0 // loop_footer
    %s20 = sadd.s32 1, %s16
  $region7: #{fwd.1} parent=0 // loop_footer_branch
    %15 = sbr.rel target = $region3
  $region8: #{fwd.1} parent=0 // loop_exit
    _

</llo_original>
